<compile_context>
chip_gen: v6e
topology: v6e:2x2x1
jax: 0.10.0
libtpu: 0.0.40
codegen_flags: <defaults>
</compile_context>

<pallas_src>
import functools

import jax
import jax.numpy as jnp
from jax.experimental import pallas as pl
from jax.experimental.pallas import tpu as pltpu

_MAX_TM = 1024  # cap on node rows per grid step (~2 MB of f32 temps per step)


def _pick_tm(n):
    """Row tile: as large as possible, but keep >=2 grid steps for v7x's 2 TCs."""
    steps = max(2, pl.cdiv(n, _MAX_TM))
    tm = pl.cdiv(n, steps)
    tm = max(8, ((tm + 7) // 8) * 8)     # sublane-align (8)
    return min(tm, _MAX_TM)


# ----------------------------- Pallas kernel --------------------------------

def _nodenn_kernel(x_ref, wx_ref, bx_ref, wh_ref, wo_ref, bo_ref, out_ref):
    """Fused NodeNN forward for one row block of nodes.

    x_ref   : [TM, F]    f32  node features
    wx_ref  : [F, 2H]    f32  = [ W1a | W2a_x ]
    bx_ref  : [1, 2H]    f32  = [ b1a | b2a + b1b @ W2a_h ]
    wh_ref  : [2H, 2H]   bf16 = [[ 0 , W1b @ W2a_h ], [ 0 , 0 ]]
    wo_ref  : [2H, OUT]  bf16 = [[ 0 ], [ W2b ]]
    bo_ref  : [1, OUT]   f32  = b2b
    out_ref : [TM, OUT]  f32

    Math (exact rewrite of the module, dropout p=0 is identity):
      t       = x @ [W1a|W2a_x] + [b1a | b2a + b1b@W2a_h]        # [TM,2H]
      relu(t)[:, :H] == h  (mlp_1 hidden)
      u       = t + relu(t) @ wh      -> u[:, H:] == g pre-activation
      out     = relu(u) @ wo + b2b    -> zeros in wo kill the u[:, :H] half
    """
    # TODO(synk): dropout=0.0 is an identity (eval semantics); no RNG dropout emitted.
    t = jnp.dot(x_ref[...], wx_ref[...],
                preferred_element_type=jnp.float32) + bx_ref[...]
    u = t + jnp.dot(jnp.maximum(t, 0.0).astype(jnp.bfloat16), wh_ref[...],
                    preferred_element_type=jnp.float32)
    out = jnp.dot(jnp.maximum(u, 0.0).astype(jnp.bfloat16), wo_ref[...],
                  preferred_element_type=jnp.float32) + bo_ref[...]
    out_ref[...] = out.astype(out_ref.dtype)


def _run_nodenn(x, wx, bx, wh, wo, bo):
    n, f = x.shape
    two_h = wx.shape[1]
    out_f = wo.shape[1]

    tm = _pick_tm(n)
    grid = (pl.cdiv(n, tm),)           # ragged last block masked by Pallas

    row = lambda i: (i, 0)             # tile over node rows
    rep = lambda i: (0, 0)             # weights / biases stay VMEM-resident

    return pl.pallas_call(
        _nodenn_kernel,
        out_shape=jax.ShapeDtypeStruct((n, out_f), jnp.float32),
        grid=grid,
        in_specs=[
            pl.BlockSpec((tm, f), row),          # x
            pl.BlockSpec((f, two_h), rep),       # wx
            pl.BlockSpec((1, two_h), rep),       # bx
            pl.BlockSpec((two_h, two_h), rep),   # wh (folded hidden weight)
            pl.BlockSpec((two_h, out_f), rep),   # wo (output projection)
            pl.BlockSpec((1, out_f), rep),       # bo
        ],
        out_specs=pl.BlockSpec((tm, out_f), row),
        compiler_params=pltpu.CompilerParams(
            dimension_semantics=("parallel",)),
    )(x, wx, bx, wh, wo, bo)


# ----------------------------- JAX wrapper -----------------------------------

class NodeNNPallas:
    """JAX/Pallas counterpart of the PyTorch NodeNN module."""

    def __init__(self, hidden_size=64, node_features=5, n_nodes=10, dropout=0.0,
                 out_features=7, key=None):
        del dropout, n_nodes  # dropout=0.0 -> identity; n_nodes unused in forward
        self.hidden_size = hidden_size
        self.node_features = node_features
        self.out_features = out_features
        if key is None:
            key = jax.random.PRNGKey(0)
        ks = jax.random.split(key, 8)

        def lin(kw, kb, fan_in, fan_out):
            # PyTorch nn.Linear default: U(-1/sqrt(fan_in), 1/sqrt(fan_in))
            lim = 1.0 / (fan_in ** 0.5)
            w = jax.random.uniform(kw, (fan_in, fan_out), jnp.float32, -lim, lim)
            b = jax.random.uniform(kb, (1, fan_out), jnp.float32, -lim, lim)
            return w, b

        f, h, o = node_features, hidden_size, out_features
        w1a, b1a = lin(ks[0], ks[1], f, h)          # mlp_1 Linear(F -> H)
        w1b, b1b = lin(ks[2], ks[3], h, h)          # mlp_1 Linear(H -> H)
        w2a, b2a = lin(ks[4], ks[5], f + h, h)      # mlp_2 Linear(F+H -> H)
        w2b, b2b = lin(ks[6], ks[7], h, o)          # mlp_2 Linear(H -> OUT)

        # f32 originals kept for the structural reference check.
        self._ref_params = (w1a, b1a, w1b, b1b, w2a, b2a, w2b, b2b)

        w2ax, w2ah = w2a[:f], w2a[f:]

        # --- algebraic fold (done in f32, exact) ---
        wfold = w1b @ w2ah                  # [H, H]: W1b @ W2a_h
        bfold = b2a + b1b @ w2ah            # [1, H]: b2a + b1b @ W2a_h

        # fused first-layer weight so x hits the MXU once: [F, 2H]
        self.wx = jnp.concatenate([w1a, w2ax], axis=1)            # f32
        self.bx = jnp.concatenate([b1a, bfold], axis=1)           # f32 [1, 2H]

        # zero-padded folded hidden weight [2H, 2H]: relu(t) @ wh adds h@Wfold
        # into the second H lanes only (no lane slicing needed in-kernel).
        wh = jnp.zeros((2 * h, 2 * h), jnp.float32).at[:h, h:].set(wfold)
        self.wh = wh.astype(jnp.bfloat16)

        # zero-padded output projection [2H, OUT]: kills the first-H half of relu(u).
        wo = jnp.zeros((2 * h, o), jnp.float32).at[h:, :].set(w2b)
        self.wo = wo.astype(jnp.bfloat16)
        self.bo = b2b                                              # [1, OUT] f32

    @functools.partial(jax.jit, static_argnums=0)
    def __call__(self, x, edge_index=None, edge_attr=None, batch=None, u=None):
        del edge_index, edge_attr, batch, u  # unused in NodeNN.forward
        x = x.astype(jnp.float32)
        return _run_nodenn(x, self.wx, self.bx, self.wh, self.wo, self.bo)

    # pure-jnp f32 reference with the ORIGINAL module structure (two MLPs + concat)
    def reference(self, x):
        w1a, b1a, w1b, b1b, w2a, b2a, w2b, b2b = self._ref_params
        h = jnp.maximum(x @ w1a + b1a, 0.0)
        x_latent = h @ w1b + b1b
        g = jnp.maximum(jnp.concatenate([x, x_latent], axis=1) @ w2a + b2a, 0.0)
        return g @ w2b + b2b


# ----------------------------- main -------------------------------------------

if __name__ == "__main__":
    key = jax.random.PRNGKey(0)
    k_params, k_x, k_x2 = jax.random.split(key, 3)

    N, F, H, OUT = 10, 5, 64, 7   # module defaults: n_nodes=10, node_features=5, out=7
    model = NodeNNPallas(hidden_size=H, node_features=F, n_nodes=N,
                         dropout=0.0, out_features=OUT, key=k_params)

    # small case (default module size; two tiny row blocks, ragged last one)
    x = jax.random.normal(k_x, (N, F), jnp.float32)
    out = jax.block_until_ready(model(x))
    ref = model.reference(x)
    assert out.shape == (N, OUT)
    assert jnp.allclose(out, ref, rtol=1e-2, atol=1e-2), float(jnp.max(jnp.abs(out - ref)))

    # larger ragged case (exercises the 2-step parallel row-block grid + masking)
    N2 = 300
    x2 = jax.random.normal(k_x2, (N2, F), jnp.float32)
    out2 = jax.block_until_ready(model(x2))
    ref2 = model.reference(x2)
    assert out2.shape == (N2, OUT)
    assert jnp.allclose(out2, ref2, rtol=1e-2, atol=1e-2), float(jnp.max(jnp.abs(out2 - ref2)))

    print("KERNEL_OK")
</pallas_src>

<mosaic_0001>
module attributes {stable_mosaic.version = 11 : i64} {
  func.func @_nodenn_kernel(%arg0: i32, %arg1: memref<8x5xf32, #tpu.memory_space<vmem>>, %arg2: memref<5x128xf32, #tpu.memory_space<vmem>>, %arg3: memref<1x128xf32, #tpu.memory_space<vmem>>, %arg4: memref<128x128xbf16, #tpu.memory_space<vmem>>, %arg5: memref<128x7xbf16, #tpu.memory_space<vmem>>, %arg6: memref<1x7xf32, #tpu.memory_space<vmem>>, %arg7: memref<8x7xf32, #tpu.memory_space<vmem>>) attributes {dimension_semantics = [#tpu.dimension_semantics<parallel>], iteration_bounds = array<i64: 2>, scalar_prefetch = 0 : i64, scratch_operands = 0 : i64, tpu.core_type = #tpu.core_type<tc>, window_params = [{transform_indices = @transform_0, window_bounds = array<i64: 8, 5>}, {pipeline_mode = #tpu.pipeline_mode<synchronous>, transform_indices = @transform_1, window_bounds = array<i64: 5, 128>}, {pipeline_mode = #tpu.pipeline_mode<synchronous>, transform_indices = @transform_2, window_bounds = array<i64: 1, 128>}, {pipeline_mode = #tpu.pipeline_mode<synchronous>, transform_indices = @transform_3, window_bounds = array<i64: 128, 128>}, {pipeline_mode = #tpu.pipeline_mode<synchronous>, transform_indices = @transform_4, window_bounds = array<i64: 128, 7>}, {pipeline_mode = #tpu.pipeline_mode<synchronous>, transform_indices = @transform_5, window_bounds = array<i64: 1, 7>}, {transform_indices = @transform_6, window_bounds = array<i64: 8, 7>}]} {
    %c0 = arith.constant 0 : index
    %c0_0 = arith.constant 0 : index
    %0 = vector.load %arg1[%c0, %c0_0] : memref<8x5xf32, #tpu.memory_space<vmem>>, vector<8x5xf32>
    %c0_1 = arith.constant 0 : index
    %c0_2 = arith.constant 0 : index
    %1 = vector.load %arg2[%c0_1, %c0_2] : memref<5x128xf32, #tpu.memory_space<vmem>>, vector<5x128xf32>
    %cst = arith.constant dense<0.000000e+00> : vector<8x128xf32>
    %2 = tpu.matmul %0, %1, %cst {dimension_numbers = #tpu.dot_dimension_numbers<[1], [0], [0], [1], [0, 0, 1, 1], [], []>} : vector<8x5xf32>, vector<5x128xf32>, vector<8x128xf32> -> vector<8x128xf32>
    %c0_3 = arith.constant 0 : index
    %c0_4 = arith.constant 0 : index
    %3 = vector.load %arg3[%c0_3, %c0_4] : memref<1x128xf32, #tpu.memory_space<vmem>>, vector<1x128xf32>
    %4 = vector.broadcast %3 : vector<1x128xf32> to vector<8x128xf32>
    %5 = arith.addf %2, %4 : vector<8x128xf32>
    %cst_5 = arith.constant 0.000000e+00 : f32
    %6 = vector.broadcast %cst_5 : f32 to vector<8x128xf32>
    %7 = arith.maximumf %5, %6 : vector<8x128xf32>
    %8 = arith.truncf %7 : vector<8x128xf32> to vector<8x128xbf16>
    %c0_6 = arith.constant 0 : index
    %c0_7 = arith.constant 0 : index
    %9 = vector.load %arg4[%c0_6, %c0_7] : memref<128x128xbf16, #tpu.memory_space<vmem>>, vector<128x128xbf16>
    %cst_8 = arith.constant dense<0.000000e+00> : vector<8x128xf32>
    %10 = tpu.matmul %8, %9, %cst_8 {dimension_numbers = #tpu.dot_dimension_numbers<[1], [0], [0], [1], [0, 0, 1, 1], [], []>} : vector<8x128xbf16>, vector<128x128xbf16>, vector<8x128xf32> -> vector<8x128xf32>
    %11 = arith.addf %5, %10 : vector<8x128xf32>
    %cst_9 = arith.constant 0.000000e+00 : f32
    %12 = vector.broadcast %cst_9 : f32 to vector<8x128xf32>
    %13 = arith.maximumf %11, %12 : vector<8x128xf32>
    %14 = arith.truncf %13 : vector<8x128xf32> to vector<8x128xbf16>
    %c0_10 = arith.constant 0 : index
    %c0_11 = arith.constant 0 : index
    %15 = vector.load %arg5[%c0_10, %c0_11] : memref<128x7xbf16, #tpu.memory_space<vmem>>, vector<128x7xbf16>
    %cst_12 = arith.constant dense<0.000000e+00> : vector<8x7xf32>
    %16 = tpu.matmul %14, %15, %cst_12 {dimension_numbers = #tpu.dot_dimension_numbers<[1], [0], [0], [1], [0, 0, 1, 1], [], []>} : vector<8x128xbf16>, vector<128x7xbf16>, vector<8x7xf32> -> vector<8x7xf32>
    %c0_13 = arith.constant 0 : index
    %c0_14 = arith.constant 0 : index
    %17 = vector.load %arg6[%c0_13, %c0_14] : memref<1x7xf32, #tpu.memory_space<vmem>>, vector<1x7xf32>
    %18 = vector.broadcast %17 : vector<1x7xf32> to vector<8x7xf32>
    %19 = arith.addf %16, %18 : vector<8x7xf32>
    %c0_15 = arith.constant 0 : index
    %c0_16 = arith.constant 0 : index
    %20 = vector.load %arg7[%c0_15, %c0_16] : memref<8x7xf32, #tpu.memory_space<vmem>>, vector<8x7xf32>
    tpu.vector_store %arg7[%c0_15, %c0_16], %19 {strides = array<i32>} : memref<8x7xf32, #tpu.memory_space<vmem>>, vector<8x7xf32>,
    return
  }
  func.func @transform_0(%arg0: i32) -> (i32, i32) {
    %c0_i32 = arith.constant 0 : i32
    %c0_i32_0 = arith.constant 0 : i32
    return %arg0, %c0_i32 : i32, i32
  }
  func.func @transform_1(%arg0: i32) -> (i32, i32) {
    %c0_i32 = arith.constant 0 : i32
    %c0_i32_0 = arith.constant 0 : i32
    %c0_i32_1 = arith.constant 0 : i32
    return %c0_i32, %c0_i32_0 : i32, i32
  }
  func.func @transform_2(%arg0: i32) -> (i32, i32) {
    %c0_i32 = arith.constant 0 : i32
    %c0_i32_0 = arith.constant 0 : i32
    %c0_i32_1 = arith.constant 0 : i32
    return %c0_i32, %c0_i32_0 : i32, i32
  }
  func.func @transform_3(%arg0: i32) -> (i32, i32) {
    %c0_i32 = arith.constant 0 : i32
    %c0_i32_0 = arith.constant 0 : i32
    %c0_i32_1 = arith.constant 0 : i32
    return %c0_i32, %c0_i32_0 : i32, i32
  }
  func.func @transform_4(%arg0: i32) -> (i32, i32) {
    %c0_i32 = arith.constant 0 : i32
    %c0_i32_0 = arith.constant 0 : i32
    %c0_i32_1 = arith.constant 0 : i32
    return %c0_i32, %c0_i32_0 : i32, i32
  }
  func.func @transform_5(%arg0: i32) -> (i32, i32) {
    %c0_i32 = arith.constant 0 : i32
    %c0_i32_0 = arith.constant 0 : i32
    %c0_i32_1 = arith.constant 0 : i32
    return %c0_i32, %c0_i32_0 : i32, i32
  }
  func.func @transform_6(%arg0: i32) -> (i32, i32) {
    %c0_i32 = arith.constant 0 : i32
    %c0_i32_0 = arith.constant 0 : i32
    return %arg0, %c0_i32 : i32, i32
  }
}

</mosaic_0001>

<llo_original>
// kernel: a_call__.1
$region0: #{a_call__.1}
  #allocation0 [shape = 'u32[]', space=smem, size = 0x4, offset = 0x4, fixed_abs, tag = 'smem constant byte address 0x4 - core index']
  #allocation1 [shape = 'u32[144,128]{1,0:T(1,128)}', space=vmem, size = 0x12000, scoped, tag = 'internal scratch']
  %s0 = inlined_call_operand.vmem [shape: f32[10,5], index: 0, kind: input, shape index: {}]
  %s1 = inlined_call_operand.vmem [shape: f32[5,128], index: 1, kind: input, shape index: {}]
  %s2 = inlined_call_operand.vmem [shape: f32[1,128], index: 2, kind: input, shape index: {}]
  %s3 = inlined_call_operand.hbm [shape: bf16[128,128], index: 3, kind: input, shape index: {}]
  %s4 = inlined_call_operand.hbm [shape: bf16[128,7], index: 4, kind: input, shape index: {}]
  %s5 = inlined_call_operand.vmem [shape: f32[1,7], index: 5, kind: input, shape index: {}]
  %s6 = inlined_call_operand.vmem [shape: f32[10,7], index: 6, kind: output, shape index: {}]
  %s7 = sld [smem:[#allocation0]]
  $region65: #{a_call__.1} parent=0
    _
  %s9 = ssub.s32 1, %s7
  %s10 = scalar_select 0, %s9, %s7
  $region1: #{a_call__.1} parent=0
    #allocation2 [shape = 'u8[32768]{0}', space=vmem, size = 0x8000, scoped, tag = 'input window, operand 3, single buffered']
    #allocation3 [shape = 's32[2]{0}', space=sflag, size = 0x8, scoped, tag = 'scoped memory for a_call__.1']
    #allocation4 [shape = 'u8[32768]{0}', space=vmem, size = 0x8000, scoped, tag = 'input window, operand 4, single buffered']
    #allocation5 [shape = 's32[1]{0}', space=sflag, size = 0x4, scoped, tag = 'scoped memory for a_call__.1']
    %11 = vsyncpa [#allocation3], 0
    %12 = vsyncpa [#allocation5], 0
    loop: start=0, step=1, limit=4
    $region2: #{a_call__.1} parent=1 // loop_pre_header
      _
    $region3: #{a_call__.1} parent=1 // loop_header
      %s14 = sphi 0, %s18
      %p15 = scmp.ge.s32.totalorder %s14, 4
      %s24 = sphi 0, %s26
      %s27 = sphi 0, %s24
      %s28 = sphi 0, %s27
      %s44 = sphi 0, %s28
      %s48 = sphi 0, %s48
      %s50 = sphi 0, %s48
      %s51 = sphi 0, %s50
      %s65 = sphi 0, %s51
      %s69 = sphi 0, %s69
      %s71 = sphi 0, %s69
      %s72 = sphi 0, %s71
      %s86 = sphi 0, %s72
      %s90 = sphi 0, %s90
      %s92 = sphi 0, %s90
      %s93 = sphi 0, %s92
      %s107 = sphi 0, %s93
      %s111 = sphi 0, %s111
      %s113 = sphi 0, %s111
      %s114 = sphi 0, %s113
      %s128 = sphi 0, %s114
      %s132 = sphi 0, %s132
      %s134 = sphi 0, %s132
      %s135 = sphi 0, %s134
      %s149 = sphi 0, %s135
      %s155 = sphi 0, %s157
      %s158 = sphi 0, %s155
      %s159 = sphi 0, %s158
      %s175 = sphi 0, %s159
    $region4: #{a_call__.1} parent=1 // loop_header_branch
      %17 = sbr.rel (%p15) target = $region8
    $region5: #{a_call__.1} parent=1 // loop_body
      %s19 = ssub.s32 %s14, 1
      %s20 = ssub.s32 %s14, 2
      %s21 = sadd.s32 %s14, 1
      %s22 = ssub.s32 %s14, %s21
      %p23 = scmp.eq.s32.totalorder %s22, 0
      %s25 = sadd.s32 %s24, 1
      %s26 = scalar_select %p23, %s24, %s25
      %p29 = pneg %p23
      %p30 = scmp.eq.s32.totalorder %s14, 1
      %p31 = por %p29, %p30
      %p32 = scmp.ne.s32.totalorder %s24, %s27
      %p33 = scmp.eq.s32.totalorder %s14, 0
      %p34 = por %p32, %p33
      %p35 = scmp.ne.s32.totalorder %s24, %s27
      %p36 = scmp.eq.s32.totalorder %s19, 1
      %p37 = por %p35, %p36
      %p38 = scmp.ne.s32.totalorder %s27, %s28
      %p39 = scmp.eq.s32.totalorder %s19, 0
      %p40 = por %p38, %p39
      %p41 = scmp.ne.s32.totalorder %s27, %s28
      %p42 = scmp.eq.s32.totalorder %s20, 1
      %p43 = por %p41, %p42
      %p45 = scmp.ne.s32.totalorder %s28, %s44
      %p46 = scmp.eq.s32.totalorder %s20, 0
      %p47 = por %p45, %p46
      %s49 = sadd.s32 %s48, 1
      %p52 = scmp.eq.s32.totalorder %s14, 1
      %p53 = scmp.ne.s32.totalorder %s48, %s50
      %p54 = scmp.eq.s32.totalorder %s14, 0
      %p55 = por %p53, %p54
      %p56 = scmp.ne.s32.totalorder %s48, %s50
      %p57 = scmp.eq.s32.totalorder %s19, 1
      %p58 = por %p56, %p57
      %p59 = scmp.ne.s32.totalorder %s50, %s51
      %p60 = scmp.eq.s32.totalorder %s19, 0
      %p61 = por %p59, %p60
      %p62 = scmp.ne.s32.totalorder %s50, %s51
      %p63 = scmp.eq.s32.totalorder %s20, 1
      %p64 = por %p62, %p63
      %p66 = scmp.ne.s32.totalorder %s51, %s65
      %p67 = scmp.eq.s32.totalorder %s20, 0
      %p68 = por %p66, %p67
      %s70 = sadd.s32 %s69, 1
      %p73 = scmp.eq.s32.totalorder %s14, 1
      %p74 = scmp.ne.s32.totalorder %s69, %s71
      %p75 = scmp.eq.s32.totalorder %s14, 0
      %p76 = por %p74, %p75
      %p77 = scmp.ne.s32.totalorder %s69, %s71
      %p78 = scmp.eq.s32.totalorder %s19, 1
      %p79 = por %p77, %p78
      %p80 = scmp.ne.s32.totalorder %s71, %s72
      %p81 = scmp.eq.s32.totalorder %s19, 0
      %p82 = por %p80, %p81
      %p83 = scmp.ne.s32.totalorder %s71, %s72
      %p84 = scmp.eq.s32.totalorder %s20, 1
      %p85 = por %p83, %p84
      %p87 = scmp.ne.s32.totalorder %s72, %s86
      %p88 = scmp.eq.s32.totalorder %s20, 0
      %p89 = por %p87, %p88
      %s91 = sadd.s32 %s90, 1
      %p94 = scmp.eq.s32.totalorder %s14, 1
      %p95 = scmp.ne.s32.totalorder %s90, %s92
      %p96 = scmp.eq.s32.totalorder %s14, 0
      %p97 = por %p95, %p96
      %p98 = scmp.ne.s32.totalorder %s90, %s92
      %p99 = scmp.eq.s32.totalorder %s19, 1
      %p100 = por %p98, %p99
      %p101 = scmp.ne.s32.totalorder %s92, %s93
      %p102 = scmp.eq.s32.totalorder %s19, 0
      %p103 = por %p101, %p102
      %p104 = scmp.ne.s32.totalorder %s92, %s93
      %p105 = scmp.eq.s32.totalorder %s20, 1
      %p106 = por %p104, %p105
      %p108 = scmp.ne.s32.totalorder %s93, %s107
      %p109 = scmp.eq.s32.totalorder %s20, 0
      %p110 = por %p108, %p109
      %s112 = sadd.s32 %s111, 1
      %p115 = scmp.eq.s32.totalorder %s14, 1
      %p116 = scmp.ne.s32.totalorder %s111, %s113
      %p117 = scmp.eq.s32.totalorder %s14, 0
      %p118 = por %p116, %p117
      %p119 = scmp.ne.s32.totalorder %s111, %s113
      %p120 = scmp.eq.s32.totalorder %s19, 1
      %p121 = por %p119, %p120
      %p122 = scmp.ne.s32.totalorder %s113, %s114
      %p123 = scmp.eq.s32.totalorder %s19, 0
      %p124 = por %p122, %p123
      %p125 = scmp.ne.s32.totalorder %s113, %s114
      %p126 = scmp.eq.s32.totalorder %s20, 1
      %p127 = por %p125, %p126
      %p129 = scmp.ne.s32.totalorder %s114, %s128
      %p130 = scmp.eq.s32.totalorder %s20, 0
      %p131 = por %p129, %p130
      %s133 = sadd.s32 %s132, 1
      %p136 = scmp.eq.s32.totalorder %s14, 1
      %p137 = scmp.ne.s32.totalorder %s132, %s134
      %p138 = scmp.eq.s32.totalorder %s14, 0
      %p139 = por %p137, %p138
      %p140 = scmp.ne.s32.totalorder %s132, %s134
      %p141 = scmp.eq.s32.totalorder %s19, 1
      %p142 = por %p140, %p141
      %p143 = scmp.ne.s32.totalorder %s134, %s135
      %p144 = scmp.eq.s32.totalorder %s19, 0
      %p145 = por %p143, %p144
      %p146 = scmp.ne.s32.totalorder %s134, %s135
      %p147 = scmp.eq.s32.totalorder %s20, 1
      %p148 = por %p146, %p147
      %p150 = scmp.ne.s32.totalorder %s135, %s149
      %p151 = scmp.eq.s32.totalorder %s20, 0
      %p152 = por %p150, %p151
      %s153 = ssub.s32 %s14, %s21
      %p154 = scmp.eq.s32.totalorder %s153, 0
      %s156 = sadd.s32 %s155, 1
      %s157 = scalar_select %p154, %s155, %s156
      %p160 = pneg %p154
      %p161 = scmp.eq.s32.totalorder %s14, 1
      %p162 = por %p160, %p161
      %p163 = scmp.ne.s32.totalorder %s155, %s158
      %p164 = scmp.eq.s32.totalorder %s14, 0
      %p165 = por %p163, %p164
      %p166 = scmp.ne.s32.totalorder %s155, %s158
      %p167 = scmp.eq.s32.totalorder %s19, 1
      %p168 = por %p166, %p167
      %p169 = scmp.ne.s32.totalorder %s158, %s159
      %p170 = scmp.eq.s32.totalorder %s19, 0
      %p171 = por %p169, %p170
      %p172 = scmp.ne.s32.totalorder %s158, %s159
      %p173 = scmp.eq.s32.totalorder %s20, 1
      %p174 = por %p172, %p173
      %p176 = scmp.ne.s32.totalorder %s159, %s175
      %p177 = scmp.eq.s32.totalorder %s20, 0
      %p178 = por %p176, %p177
      %p179 = scmp.le.s32.totalorder 1, %s14
      %p180 = scmp.lt.s32.totalorder %s14, 3
      %p181 = pnand %p179, %p180
      %p182 = pneg %p181
      // Predicated region
      $region9: #{a_call__.1} parent=5 // pred_check
        _
      $region10: #{a_call__.1} parent=5 // pred_check_branch
        %184 = sbr.rel (%p181) target = $region12
      $region11: #{a_call__.1} parent=5 // pred_region
        %s185 = ssub.s32 %s14, 1
        // Predicated region
        $region13: #{a_call__.1} parent=11 // pred_check
          %p186 = pneg %p61
        $region14: #{a_call__.1} parent=11 // pred_check_branch
          %188 = sbr.rel (%p186) target = $region16
        $region15: #{a_call__.1} parent=11 // pred_region
          _
        $region16: #{a_call__.1} parent=11 // pred_fallthru
          _
        // Predicated region
        $region17: #{a_call__.1} parent=11 // pred_check
          %p189 = pneg %p82
        $region18: #{a_call__.1} parent=11 // pred_check_branch
          %191 = sbr.rel (%p189) target = $region20
        $region19: #{a_call__.1} parent=11 // pred_region
          _
        $region20: #{a_call__.1} parent=11 // pred_fallthru
          _
        // Predicated region
        $region21: #{a_call__.1} parent=11 // pred_check
          %p192 = pneg %p103
        $region22: #{a_call__.1} parent=11 // pred_check_branch
          %194 = sbr.rel (%p192) target = $region24
        $region23: #{a_call__.1} parent=11 // pred_region
          %s196 = ssub.s32 1024, 1024
          %197 = vsyncadd [#allocation3], %s196
          %s198 = sshll.u32 [#allocation2], 4
          %s199 = int_to_ptr.vmem [resolvable:$true] %s198
          %204 = dma.hbm_to_vmem [thread:$0]  %s3, 1024, %s199, [#allocation3], 64, 64, 4
        $region24: #{a_call__.1} parent=11 // pred_fallthru
          _
        // Predicated region
        $region25: #{a_call__.1} parent=11 // pred_check
          %p205 = pneg %p124
        $region26: #{a_call__.1} parent=11 // pred_check_branch
          %207 = sbr.rel (%p205) target = $region28
        $region27: #{a_call__.1} parent=11 // pred_region
          %s209 = ssub.s32 1024, 1024
          %210 = vsyncadd [#allocation5], %s209
          %s211 = sshll.u32 [#allocation4], 4
          %s212 = int_to_ptr.vmem [resolvable:$true] %s211
          %217 = dma.hbm_to_vmem [thread:$0]  %s4, 1024, %s212, [#allocation5], 64, 64, 4
        $region28: #{a_call__.1} parent=11 // pred_fallthru
          _
        // Predicated region
        $region29: #{a_call__.1} parent=11 // pred_check
          %p218 = pneg %p145
        $region30: #{a_call__.1} parent=11 // pred_check_branch
          %220 = sbr.rel (%p218) target = $region32
        $region31: #{a_call__.1} parent=11 // pred_region
          _
        $region32: #{a_call__.1} parent=11 // pred_fallthru
          _
      $region12: #{a_call__.1} parent=5 // pred_fallthru
        _
      %p221 = scmp.lt.s32.totalorder %s14, 2
      // Predicated region
      $region33: #{a_call__.1} parent=5 // pred_check
        %p222 = pneg %p221
      $region34: #{a_call__.1} parent=5 // pred_check_branch
        %224 = sbr.rel (%p222) target = $region36
      $region35: #{a_call__.1} parent=5 // pred_region
        // Predicated region
        $region37: #{a_call__.1} parent=35 // pred_check
          %p225 = pneg %p34
        $region38: #{a_call__.1} parent=35 // pred_check_branch
          %227 = sbr.rel (%p225) target = $region40
        $region39: #{a_call__.1} parent=35 // pred_region
          %p228 = scmp.lt.s32.totalorder %s14, 1
          %s229 = scalar_select %p228, %s14, 1
          %s230 = smul.addr %s229, 8
          %s231 = scalar_lea.vmem %s0, %s230
        $region40: #{a_call__.1} parent=35 // pred_fallthru
          _
      $region36: #{a_call__.1} parent=5 // pred_fallthru
        _
      %p232 = scmp.le.s32.totalorder 1, %s14
      %p233 = scmp.lt.s32.totalorder %s14, 3
      %p234 = pnand %p232, %p233
      %p235 = pneg %p234
      // Predicated region
      $region41: #{a_call__.1} parent=5 // pred_check
        _
      $region42: #{a_call__.1} parent=5 // pred_check_branch
        %237 = sbr.rel (%p234) target = $region44
      $region43: #{a_call__.1} parent=5 // pred_region
        %s238 = ssub.s32 %s14, 1
        // Predicated region
        $region45: #{a_call__.1} parent=43 // pred_check
          %p239 = pneg %p103
        $region46: #{a_call__.1} parent=43 // pred_check_branch
          %241 = sbr.rel (%p239) target = $region48
        $region47: #{a_call__.1} parent=43 // pred_region
          %242 = dma.done [#allocation3], 1024
        $region48: #{a_call__.1} parent=43 // pred_fallthru
          _
        // Predicated region
        $region49: #{a_call__.1} parent=43 // pred_check
          %p243 = pneg %p124
        $region50: #{a_call__.1} parent=43 // pred_check_branch
          %245 = sbr.rel (%p243) target = $region52
        $region51: #{a_call__.1} parent=43 // pred_region
          %246 = dma.done [#allocation5], 1024
        $region52: #{a_call__.1} parent=43 // pred_fallthru
          _
        %p247 = scmp.lt.s32.totalorder %s19, 1
        %s248 = scalar_select %p247, %s19, 1
        %s249 = smul.addr %s248, 8
        %s250 = scalar_lea.vmem %s0, %s249
        %p251 = pneg %p40
        %p252 = pneg %p37
        %p253 = pneg %p61
        %p254 = pneg %p58
        %p255 = pneg %p82
        %p256 = pneg %p79
        %p257 = pneg %p103
        %p258 = pneg %p100
        %p259 = pneg %p124
        %p260 = pneg %p121
        %p261 = pneg %p145
        %p262 = pneg %p142
        %p263 = pneg %p171
        %p264 = pneg %p168
        %p265 = scmp.lt.s32.totalorder %s19, 1
        %s266 = scalar_select %p265, %s19, 1
        %s267 = smul.addr %s266, 8
        %s268 = scalar_lea.vmem %s6, %s267
        %p269 = scmp.lt.s32.totalorder %s19, 1
        %s270 = scalar_select %p269, %s19, 1
        %s271 = smul.addr %s270, 8
        %s272 = scalar_lea.vmem %s0, %s271
        %p273 = scmp.lt.s32.totalorder %s19, 1
        %s274 = scalar_select %p273, %s19, 1
        %s275 = smul.addr %s274, 8
        %s276 = scalar_lea.vmem %s6, %s275
        %v278 = vld [vmem:[%s272] sm:$0xff]
        %v279 = vld [vmem:[%s1] sm:$0x1f]
        %v280 = vld [vmem:[%s2] sm:$0x1]
        %v282 = vlaneseq
        %v283 = vshrl.u32 %v282, 7
        %v284 = vsub.s32 0, %v283
        %v285 = vrot.slane %v280, %v284
        %vm287 = vcmask 39936
        %v289 = vsel %vm287, %v278, 0
        %vm291 = vcmask 1044480
        %v293 = vsel %vm291, %v279, 0
        %295 = vmatprep.subr.mxu0 0.0
        %296 = vmatpush1.msra.mxu0 0.0
        %297 = vmatprep.subr.mxu0 0.0
        %298 = vmatpush1.msra.mxu0 0.0
        %299 = vmatprep.subr.mxu0 0.0
        %300 = vmatpush1.msra.mxu0 0.0
        %301 = vmatprep.subr.mxu0 0.0
        %302 = vmatpush1.msra.mxu0 0.0
        %303 = vmatprep.subr.mxu0 0.0
        %304 = vmatpush1.msra.mxu0 0.0
        %305 = vmatprep.subr.mxu0 0.0
        %306 = vmatpush1.msra.mxu0 0.0
        %307 = vmatprep.subr.mxu0 0.0
        %308 = vmatpush1.msra.mxu0 0.0
        %309 = vmatprep.subr.mxu0 0.0
        %310 = vmatpush1.msra.mxu0 0.0
        %311 = vmatprep.subr.mxu0 0.0
        %312 = vmatpush1.msra.mxu0 0.0
        %313 = vmatprep.subr.mxu0 0.0
        %314 = vmatpush1.msra.mxu0 0.0
        %315 = vmatprep.subr.mxu0 0.0
        %316 = vmatpush1.msra.mxu0 0.0
        %317 = vmatprep.subr.mxu0 0.0
        %318 = vmatpush1.msra.mxu0 0.0
        %319 = vmatprep.subr.mxu0 0.0
        %320 = vmatpush1.msra.mxu0 0.0
        %321 = vmatprep.subr.mxu0 0.0
        %322 = vmatpush1.msra.mxu0 0.0
        %323 = vmatprep.subr.mxu0 0.0
        %324 = vmatpush1.msra.mxu0 0.0
        %325 = vmatprep.subr.mxu0 0.0
        %326 = vmatpush1.msra.mxu0 %v293
        %327 = vmatprep.subr.mxu0 0.0
        %328 = vmatpush2.msra.mxu0 0.0
        %329 = vmatprep.subr.mxu0 0.0
        %330 = vmatpush2.msra.mxu0 0.0
        %331 = vmatprep.subr.mxu0 0.0
        %332 = vmatpush2.msra.mxu0 0.0
        %333 = vmatprep.subr.mxu0 0.0
        %334 = vmatpush2.msra.mxu0 0.0
        %335 = vmatprep.subr.mxu0 0.0
        %336 = vmatpush2.msra.mxu0 0.0
        %337 = vmatprep.subr.mxu0 0.0
        %338 = vmatpush2.msra.mxu0 0.0
        %339 = vmatprep.subr.mxu0 0.0
        %340 = vmatpush2.msra.mxu0 0.0
        %341 = vmatprep.subr.mxu0 0.0
        %342 = vmatpush2.msra.mxu0 0.0
        %343 = vmatprep.subr.mxu0 0.0
        %344 = vmatpush2.msra.mxu0 0.0
        %345 = vmatprep.subr.mxu0 0.0
        %346 = vmatpush2.msra.mxu0 0.0
        %347 = vmatprep.subr.mxu0 0.0
        %348 = vmatpush2.msra.mxu0 0.0
        %349 = vmatprep.subr.mxu0 0.0
        %350 = vmatpush2.msra.mxu0 0.0
        %351 = vmatprep.subr.mxu0 0.0
        %352 = vmatpush2.msra.mxu0 0.0
        %353 = vmatprep.subr.mxu0 0.0
        %354 = vmatpush2.msra.mxu0 0.0
        %355 = vmatprep.subr.mxu0 0.0
        %356 = vmatpush2.msra.mxu0 0.0
        %357 = vmatprep.subr.mxu0 0.0
        %358 = vmatpush2.msra.mxu0 0.0
        %359 = vmatprep.mubr.f32.mxu0 0.0
        %360 = vmatmul.mubr.f32.gmra.mxu0 %v289
        %v361 = vpop.f32.mrf.mxu0
        %v362 = vadd.f32 %v285, %v361
        %v363 = vpop.f32.mrf.mxu0
        %364 = vdwg.mxu0
        %v365 = vmax.f32 %v362, 0.0
        %v366 = vpack.c.bf16 %v365, %v365
        %v367 = vld [vmem:[#allocation2] sm:$0xf]
        %v368 = vld [vmem:[#allocation2 + $0x4] sm:$0xf]
        %v369 = vld [vmem:[#allocation2 + $0x8] sm:$0xf]
        %v370 = vld [vmem:[#allocation2 + $0xc] sm:$0xf]
        %v371 = vld [vmem:[#allocation2 + $0x10] sm:$0xf]
        %v372 = vld [vmem:[#allocation2 + $0x14] sm:$0xf]
        %v373 = vld [vmem:[#allocation2 + $0x18] sm:$0xf]
        %v374 = vld [vmem:[#allocation2 + $0x1c] sm:$0xf]
        %v375 = vld [vmem:[#allocation2 + $0x20] sm:$0xf]
        %v376 = vld [vmem:[#allocation2 + $0x24] sm:$0xf]
        %v377 = vld [vmem:[#allocation2 + $0x28] sm:$0xf]
        %v378 = vld [vmem:[#allocation2 + $0x2c] sm:$0xf]
        %v379 = vld [vmem:[#allocation2 + $0x30] sm:$0xf]
        %v380 = vld [vmem:[#allocation2 + $0x34] sm:$0xf]
        %v381 = vld [vmem:[#allocation2 + $0x38] sm:$0xf]
        %v382 = vld [vmem:[#allocation2 + $0x3c] sm:$0xf]
        %v399 = vunpack.c.l.b16 %v367
        %v400 = vunpack.c.l.b16 %v368
        %v401 = vunpack.c.l.b16 %v369
        %v402 = vunpack.c.l.b16 %v370
        %v403 = vunpack.c.l.b16 %v371
        %v404 = vunpack.c.l.b16 %v372
        %v405 = vunpack.c.l.b16 %v373
        %v406 = vunpack.c.l.b16 %v374
        %v407 = vunpack.c.l.b16 %v375
        %v408 = vunpack.c.l.b16 %v376
        %v409 = vunpack.c.l.b16 %v377
        %v410 = vunpack.c.l.b16 %v378
        %v411 = vunpack.c.l.b16 %v379
        %v412 = vunpack.c.l.b16 %v380
        %v413 = vunpack.c.l.b16 %v381
        %v414 = vunpack.c.l.b16 %v382
        %v415 = vpack.c.b16 %v400, %v399
        %v416 = vpack.c.b16 %v402, %v401
        %v417 = vpack.c.b16 %v404, %v403
        %v418 = vpack.c.b16 %v406, %v405
        %v419 = vpack.c.b16 %v408, %v407
        %v420 = vpack.c.b16 %v410, %v409
        %v421 = vpack.c.b16 %v412, %v411
        %v422 = vpack.c.b16 %v414, %v413
        %431 = vmatprep.subr.bf16.mxu0 0
        %432 = vmatpush1.bf16.msra.mxu0 %v422
        %433 = vmatprep.subr.bf16.mxu0 0
        %434 = vmatpush1.bf16.msra.mxu0 %v421
        %435 = vmatprep.subr.bf16.mxu0 0
        %436 = vmatpush1.bf16.msra.mxu0 %v420
        %437 = vmatprep.subr.bf16.mxu0 0
        %438 = vmatpush1.bf16.msra.mxu0 %v419
        %439 = vmatprep.subr.bf16.mxu0 0
        %440 = vmatpush1.bf16.msra.mxu0 %v418
        %441 = vmatprep.subr.bf16.mxu0 0
        %442 = vmatpush1.bf16.msra.mxu0 %v417
        %443 = vmatprep.subr.bf16.mxu0 0
        %444 = vmatpush1.bf16.msra.mxu0 %v416
        %445 = vmatprep.subr.bf16.mxu0 0
        %446 = vmatpush1.bf16.msra.mxu0 %v415
        %447 = vmatprep.subr.bf16.mxu0 0
        %448 = vmatpush2.bf16.msra.mxu0 0
        %449 = vmatprep.subr.bf16.mxu0 0
        %450 = vmatpush2.bf16.msra.mxu0 0
        %451 = vmatprep.subr.bf16.mxu0 0
        %452 = vmatpush2.bf16.msra.mxu0 0
        %453 = vmatprep.subr.bf16.mxu0 0
        %454 = vmatpush2.bf16.msra.mxu0 0
        %455 = vmatprep.subr.bf16.mxu0 0
        %456 = vmatpush2.bf16.msra.mxu0 0
        %457 = vmatprep.subr.bf16.mxu0 0
        %458 = vmatpush2.bf16.msra.mxu0 0
        %459 = vmatprep.subr.bf16.mxu0 0
        %460 = vmatpush2.bf16.msra.mxu0 0
        %461 = vmatprep.subr.bf16.mxu0 0
        %462 = vmatpush2.bf16.msra.mxu0 0
        %463 = vmatprep.mubr.bf16.mxu0 0
        %464 = vmatmul.mubr.bf16.gmra.mxu0 %v366
        %v465 = vpop.f32.mrf.mxu0
        %v466 = vadd.f32 0.0, %v465
        %v467 = vpop.f32.mrf.mxu0
        %v468 = vpop.f32.mrf.mxu0
        %v469 = vpop.f32.mrf.mxu0
        %470 = vdwg.mxu0
        %v471 = vadd.f32 %v362, %v466
        %v472 = vmax.f32 %v471, 0.0
        %v473 = vpack.c.bf16 %v472, %v472
        %v474 = vld [vmem:[#allocation4] sm:$0xf]
        %v475 = vld [vmem:[#allocation4 + $0x4] sm:$0xf]
        %v476 = vld [vmem:[#allocation4 + $0x8] sm:$0xf]
        %v477 = vld [vmem:[#allocation4 + $0xc] sm:$0xf]
        %v478 = vld [vmem:[#allocation4 + $0x10] sm:$0xf]
        %v479 = vld [vmem:[#allocation4 + $0x14] sm:$0xf]
        %v480 = vld [vmem:[#allocation4 + $0x18] sm:$0xf]
        %v481 = vld [vmem:[#allocation4 + $0x1c] sm:$0xf]
        %v482 = vld [vmem:[#allocation4 + $0x20] sm:$0xf]
        %v483 = vld [vmem:[#allocation4 + $0x24] sm:$0xf]
        %v484 = vld [vmem:[#allocation4 + $0x28] sm:$0xf]
        %v485 = vld [vmem:[#allocation4 + $0x2c] sm:$0xf]
        %v486 = vld [vmem:[#allocation4 + $0x30] sm:$0xf]
        %v487 = vld [vmem:[#allocation4 + $0x34] sm:$0xf]
        %v488 = vld [vmem:[#allocation4 + $0x38] sm:$0xf]
        %v489 = vld [vmem:[#allocation4 + $0x3c] sm:$0xf]
        %v490 = vld [vmem:[%s5] sm:$0x1]
        %v492 = vlaneseq
        %v493 = vshrl.u32 %v492, 7
        %v494 = vsub.s32 0, %v493
        %v495 = vrot.slane %v490, %v494
        %v513 = vunpack.c.l.b16 %v474
        %v514 = vunpack.c.l.b16 %v475
        %v515 = vunpack.c.l.b16 %v476
        %v516 = vunpack.c.l.b16 %v477
        %v517 = vunpack.c.l.b16 %v478
        %v518 = vunpack.c.l.b16 %v479
        %v519 = vunpack.c.l.b16 %v480
        %v520 = vunpack.c.l.b16 %v481
        %v521 = vunpack.c.l.b16 %v482
        %v522 = vunpack.c.l.b16 %v483
        %v523 = vunpack.c.l.b16 %v484
        %v524 = vunpack.c.l.b16 %v485
        %v525 = vunpack.c.l.b16 %v486
        %v526 = vunpack.c.l.b16 %v487
        %v527 = vunpack.c.l.b16 %v488
        %v528 = vunpack.c.l.b16 %v489
        %v529 = vpack.c.b16 %v514, %v513
        %v530 = vpack.c.b16 %v516, %v515
        %v531 = vpack.c.b16 %v518, %v517
        %v532 = vpack.c.b16 %v520, %v519
        %v533 = vpack.c.b16 %v522, %v521
        %v534 = vpack.c.b16 %v524, %v523
        %v535 = vpack.c.b16 %v526, %v525
        %v536 = vpack.c.b16 %v528, %v527
        %545 = vmatprep.subr.bf16.mxu0 0
        %546 = vmatpush1.bf16.msra.mxu0 %v536
        %547 = vmatprep.subr.bf16.mxu0 0
        %548 = vmatpush1.bf16.msra.mxu0 %v535
        %549 = vmatprep.subr.bf16.mxu0 0
        %550 = vmatpush1.bf16.msra.mxu0 %v534
        %551 = vmatprep.subr.bf16.mxu0 0
        %552 = vmatpush1.bf16.msra.mxu0 %v533
        %553 = vmatprep.subr.bf16.mxu0 0
        %554 = vmatpush1.bf16.msra.mxu0 %v532
        %555 = vmatprep.subr.bf16.mxu0 0
        %556 = vmatpush1.bf16.msra.mxu0 %v531
        %557 = vmatprep.subr.bf16.mxu0 0
        %558 = vmatpush1.bf16.msra.mxu0 %v530
        %559 = vmatprep.subr.bf16.mxu0 0
        %560 = vmatpush1.bf16.msra.mxu0 %v529
        %561 = vmatprep.subr.bf16.mxu0 0
        %562 = vmatpush2.bf16.msra.mxu0 0
        %563 = vmatprep.subr.bf16.mxu0 0
        %564 = vmatpush2.bf16.msra.mxu0 0
        %565 = vmatprep.subr.bf16.mxu0 0
        %566 = vmatpush2.bf16.msra.mxu0 0
        %567 = vmatprep.subr.bf16.mxu0 0
        %568 = vmatpush2.bf16.msra.mxu0 0
        %569 = vmatprep.subr.bf16.mxu0 0
        %570 = vmatpush2.bf16.msra.mxu0 0
        %571 = vmatprep.subr.bf16.mxu0 0
        %572 = vmatpush2.bf16.msra.mxu0 0
        %573 = vmatprep.subr.bf16.mxu0 0
        %574 = vmatpush2.bf16.msra.mxu0 0
        %575 = vmatprep.subr.bf16.mxu0 0
        %576 = vmatpush2.bf16.msra.mxu0 0
        %577 = vmatprep.mubr.bf16.mxu0 0
        %578 = vmatmul.mubr.bf16.gmra.mxu0 %v473
        %v579 = vpop.f32.mrf.mxu0
        %v580 = vadd.f32 %v495, %v579
        %v581 = vpop.f32.mrf.mxu0
        %v582 = vpop.f32.mrf.mxu0
        %v583 = vpop.f32.mrf.mxu0
        %584 = vdwg.mxu0
        %vm585 = vcmask 56320
        %586 = vst.msk [vmem:[%s276] sm:$0xff] %vm585, %v580
        %p587 = scmp.lt.s32.totalorder %s19, 1
        %s588 = scalar_select %p587, %s19, 1
        %s589 = smul.addr %s588, 8
        %s590 = scalar_lea.vmem %s6, %s589
        // Predicated region
        $region53: #{a_call__.1} parent=43 // pred_check
          %p591 = pneg %p168
        $region54: #{a_call__.1} parent=43 // pred_check_branch
          %593 = sbr.rel (%p591) target = $region56
        $region55: #{a_call__.1} parent=43 // pred_region
          _
        $region56: #{a_call__.1} parent=43 // pred_fallthru
          _
      $region44: #{a_call__.1} parent=5 // pred_fallthru
        _
      %p594 = scmp.le.s32.totalorder 2, %s14
      // Predicated region
      $region57: #{a_call__.1} parent=5 // pred_check
        %p595 = pneg %p594
      $region58: #{a_call__.1} parent=5 // pred_check_branch
        %597 = sbr.rel (%p595) target = $region60
      $region59: #{a_call__.1} parent=5 // pred_region
        %s598 = ssub.s32 %s14, 2
        // Predicated region
        $region61: #{a_call__.1} parent=59 // pred_check
          %p599 = pneg %p174
        $region62: #{a_call__.1} parent=59 // pred_check_branch
          %601 = sbr.rel (%p599) target = $region64
        $region63: #{a_call__.1} parent=59 // pred_region
          %p602 = scmp.lt.s32.totalorder %s20, 1
          %s603 = scalar_select %p602, %s20, 1
          %s604 = smul.addr %s603, 8
          %s605 = scalar_lea.vmem %s6, %s604
        $region64: #{a_call__.1} parent=59 // pred_fallthru
          _
      $region60: #{a_call__.1} parent=5 // pred_fallthru
        _
    $region6: #{a_call__.1} parent=1 // loop_footer
      %s18 = sadd.s32 1, %s14
    $region7: #{a_call__.1} parent=1 // loop_footer_branch
      %13 = sbr.rel target = $region3
    $region8: #{a_call__.1} parent=1 // loop_exit
      _
    %606 = vsyncpa [#allocation3], 1
    %s607 = scalar_lea.sflag [#allocation3], 1
    %608 = vsyncpa %s607, 1
    %609 = vsyncpa [#allocation5], 1

</llo_original>
